<compile_context>
chip_gen: v6e
topology: v6e:2x2x1
jax: 0.10.0
libtpu: 0.0.40
codegen_flags: <defaults>
</compile_context>

<pallas_src>
import functools

import numpy as np
import jax
import jax.numpy as jnp
from jax.experimental import pallas as pl
from jax.experimental.pallas import tpu as pltpu


def _round_up(x, m):
    return ((x + m - 1) // m) * m


# ----------------------------- Pallas kernel -------------------------------

def _qconv_fused_kernel(x_ref, halo_ref, w_ref, b_ref, o_ref, *, shifts, tm):
    # x_ref:    (1, Cin, TM)   bf16 -- pixel tile t of the flattened padded
    #                                  image (pixel index on the lane axis)
    # halo_ref: (1, Cin, HALO) bf16 -- first HALO lanes of tile t+1 (halo only)
    # w_ref:    (Cout, KH*KW*Cin) bf16 -- tap-stacked Hamilton-product weight
    # b_ref:    (Cout, 1) f32
    # o_ref:    (1, Cout, TM) f32    -- lane-dense output tile
    xx = jnp.concatenate([x_ref[0], halo_ref[0]], axis=-1)     # (Cin, TM+HALO)
    # In-VMEM im2col: every kernel tap is a static lane-offset window of xx.
    # Stack the KH*KW windows along the contraction (sublane) axis and issue a
    # SINGLE MXU matmul with f32 accumulation (no per-tap VALU accumulate).
    patch = jnp.concatenate([xx[:, s:s + tm] for s in shifts], axis=0)
    acc = jnp.dot(w_ref[...], patch, preferred_element_type=jnp.float32)
    o_ref[0] = (acc + b_ref[...]).astype(o_ref.dtype)


def _fused_conv_gemm(x_flat, w_stack, b_col, shifts, tm, halo, num_tiles):
    N, Cin, _ = x_flat.shape
    Cout, K = w_stack.shape
    hpt = tm // halo                         # halo blocks per pixel tile
    kernel = functools.partial(_qconv_fused_kernel,
                               shifts=tuple(shifts), tm=tm)
    return pl.pallas_call(
        kernel,
        out_shape=jax.ShapeDtypeStruct((N, Cout, num_tiles * tm), jnp.float32),
        grid_spec=pltpu.PrefetchScalarGridSpec(
            num_scalar_prefetch=0,
            grid=(N, num_tiles),
            in_specs=[
                # pixel tile t
                pl.BlockSpec((1, Cin, tm), lambda n, t: (n, 0, t)),
                # halo-sized look-ahead (start of tile t+1), NOT a full tile
                pl.BlockSpec((1, Cin, halo),
                             lambda n, t: (n, 0, (t + 1) * hpt)),
                # constant-per-grid weight / bias (tiny, stay VMEM-resident)
                pl.BlockSpec((Cout, K), lambda n, t: (0, 0)),
                pl.BlockSpec((Cout, 1), lambda n, t: (0, 0)),
            ],
            out_specs=pl.BlockSpec((1, Cout, tm), lambda n, t: (n, 0, t)),
        ),
        compiler_params=pltpu.CompilerParams(
            dimension_semantics=("parallel", "parallel"),
            vmem_limit_bytes=32 * 1024 * 1024),
    )(x_flat, x_flat, w_stack, b_col)


# ------------------------------ JAX glue ------------------------------------

def quaternion_kernel_matrix(r, i, j, k):
    """Hamilton-product weight, identical to quaternion_conv's torch.cat graph."""
    Wr = jnp.concatenate([r, -i, -j, -k], axis=1)
    Wi = jnp.concatenate([i,  r, -k,  j], axis=1)
    Wj = jnp.concatenate([j,  k,  r, -i], axis=1)
    Wk = jnp.concatenate([k, -j,  i,  r], axis=1)
    return jnp.concatenate([Wr, Wi, Wj, Wk], axis=0)  # (4*out, 4*in, KH, KW)


def unilateral_quaternion_conv(x, r_w, i_w, j_w, k_w, bias,
                               stride=1, padding=0, dilation=1, groups=1,
                               tile_pixels=1024):
    # TODO(synk): groups > 1 and the rotation=True forward path not implemented.
    # TODO(synk): stride > 1 computes the dense stride-1 grid and subsamples
    #             (correct, but ~stride^2 extra MXU/DMA work).
    # TODO(synk): when Hp*Wp << tile_pixels, flatten batch images into the
    #             pixel axis so TM stays >= 1024 (needs an N<->C transpose).
    assert groups == 1
    W = quaternion_kernel_matrix(r_w, i_w, j_w, k_w)      # (Cout, Cin, KH, KW)
    Cout, Cin, KH, KW = W.shape
    N, C, H, Wd = x.shape
    assert C == Cin

    Hp, Wp = H + 2 * padding, Wd + 2 * padding
    OH = (Hp - dilation * (KH - 1) - 1) // stride + 1
    OW = (Wp - dilation * (KW - 1) - 1) // stride + 1

    # Static lane shift of the flattened padded image for each kernel tap.
    shifts = [kh * dilation * Wp + kw * dilation
              for kh in range(KH) for kw in range(KW)]
    halo = _round_up(max(max(shifts), 1), 128)            # look-ahead lanes

    P_img = Hp * Wp
    tm = _round_up(min(tile_pixels, P_img), 128)          # lane-dense tile
    tm = _round_up(tm, halo)                              # halo blocks align
    num_tiles = -(-P_img // tm)
    K = KH * KW * Cin

    # Rough per-step VMEM footprint (double-buffered ins/outs + in-kernel
    # temporaries).  Keep well under the 32 MiB scoped limit so the same
    # tiling is also safe on v7x (64 MiB physical VMEM per TensorCore).
    est = (2 * (Cin * tm + Cin * halo) * 2        # bf16 input tiles (x2 buf)
           + 2 * Cout * tm * 4                    # f32 output tiles (x2 buf)
           + Cout * K * 2 + Cout * 4              # weight + bias
           + (Cin * (tm + halo) + K * tm) * 2     # concat + stacked patch
           + Cout * tm * 4)                       # f32 accumulator
    assert est < 28 * 1024 * 1024, (
        f"pixel tile too large for VMEM budget ({est} B); lower tile_pixels")

    # ONE fused pad: spatial zero-padding plus the flattened zero tail
    # (expressed as extra zero rows at the bottom) in a single jnp.pad.
    tail = num_tiles * tm + halo - P_img
    extra_rows = -(-max(tail, 0) // Wp)
    x_bf = x.astype(jnp.bfloat16)
    x_pad = jnp.pad(x_bf, ((0, 0), (0, 0),
                           (padding, padding + extra_rows),
                           (padding, padding)))
    x_flat = x_pad.reshape(N, Cin, (Hp + extra_rows) * Wp)

    # (Cout, KH*KW*Cin) tap-stacked Hamilton weight; column order matches the
    # in-kernel patch stacking (tap-major, channel-minor). Final layout + bf16
    # cast done here so no layout work happens inside the kernel.
    w_stack = W.transpose(0, 2, 3, 1).reshape(Cout, K).astype(jnp.bfloat16)
    if bias is None:
        bias = jnp.zeros((Cout,), jnp.float32)
    b_col = bias.reshape(Cout, 1).astype(jnp.float32)

    out_full = _fused_conv_gemm(x_flat, w_stack, b_col, shifts, tm, halo,
                                num_tiles)
    # Valid (strided) output window -> NCHW. out_full's edge columns hold
    # wrap-around pixels and are dropped here.
    out = out_full[:, :, :P_img].reshape(N, Cout, Hp, Wp)
    out = out[:, :, 0:(OH - 1) * stride + 1:stride,
                    0:(OW - 1) * stride + 1:stride]
    return out


# ------------------------- deterministic parameters --------------------------

def make_quaternion_params(in_channels, out_channels, kernel_size, seed=1234,
                           init_criterion='glorot'):
    """Mirrors UnilateralQuaternionConv.__init__ / init_parameters ('unitary')."""
    rng = np.random.RandomState(seed)
    w_shape = (out_channels, in_channels, kernel_size, kernel_size)
    if init_criterion == 'glorot':
        limit = np.sqrt(6.0 / (in_channels + out_channels))
        draw = lambda: rng.uniform(-limit, limit, w_shape).astype(np.float32)
    else:  # 'he'
        std = np.sqrt(2.0 / in_channels)
        draw = lambda: (rng.normal(0.0, std, w_shape)).astype(np.float32)
    r_w, i_w, j_w, k_w = draw(), draw(), draw(), draw()
    bias = np.zeros((out_channels * 4,), np.float32)     # module zero-inits bias
    return (jnp.asarray(r_w), jnp.asarray(i_w), jnp.asarray(j_w),
            jnp.asarray(k_w), jnp.asarray(bias))


# ----------------------------------- main ------------------------------------

if __name__ == "__main__":
    # Module config: in_channels=1, out_channels=2 (quaternion channels)
    #   -> real input channels = 4, real output channels = 8
    in_channels, out_channels, kernel_size = 1, 2, 3
    stride, padding, dilation = 1, 0, 1

    r_w, i_w, j_w, k_w, bias = make_quaternion_params(
        in_channels, out_channels, kernel_size, seed=1234)

    key = jax.random.PRNGKey(0)
    x = jax.random.normal(key, (2, 4 * in_channels, 16, 16), dtype=jnp.float32)

    out = unilateral_quaternion_conv(x, r_w, i_w, j_w, k_w, bias,
                                     stride=stride, padding=padding,
                                     dilation=dilation)
    out = jax.block_until_ready(out)
    assert out.shape == (2, 4 * out_channels, 14, 14), out.shape

    # Reference: XLA conv on the SAME bf16-rounded operands with f32
    # accumulation -> only summation-order differences remain, so the check
    # can be tight (far tighter than the old 5e-2).
    W = quaternion_kernel_matrix(r_w, i_w, j_w, k_w)
    x_ref = x.astype(jnp.bfloat16).astype(jnp.float32)
    W_ref = W.astype(jnp.bfloat16).astype(jnp.float32)
    ref = jax.lax.conv_general_dilated(
        x_ref, W_ref, window_strides=(stride, stride),
        padding=[(padding, padding), (padding, padding)],
        rhs_dilation=(dilation, dilation),
        dimension_numbers=('NCHW', 'OIHW', 'NCHW'),
        precision=jax.lax.Precision.HIGHEST)
    ref = ref + bias.reshape(1, -1, 1, 1)
    np.testing.assert_allclose(np.asarray(out), np.asarray(ref),
                               rtol=1e-3, atol=1e-3)

    print("KERNEL_OK")
</pallas_src>

<mosaic_0001>
module attributes {stable_mosaic.version = 11 : i64} {
  func.func @_qconv_fused_kernel(%arg0: i32, %arg1: i32, %arg2: memref<1x4x256xbf16, #tpu.memory_space<vmem>>, %arg3: memref<1x4x128xbf16, #tpu.memory_space<vmem>>, %arg4: memref<8x36xbf16, #tpu.memory_space<vmem>>, %arg5: memref<8x1xf32, #tpu.memory_space<vmem>>, %arg6: memref<1x8x256xf32, #tpu.memory_space<vmem>>) attributes {dimension_semantics = [#tpu.dimension_semantics<parallel>, #tpu.dimension_semantics<parallel>], iteration_bounds = array<i64: 2, 1>, scalar_prefetch = 0 : i64, scratch_operands = 0 : i64, tpu.core_type = #tpu.core_type<tc>, window_params = [{transform_indices = @transform_0, window_bounds = array<i64: 1, 4, 256>}, {transform_indices = @transform_1, window_bounds = array<i64: 1, 4, 128>}, {pipeline_mode = #tpu.pipeline_mode<synchronous>, transform_indices = @transform_2, window_bounds = array<i64: 8, 36>}, {pipeline_mode = #tpu.pipeline_mode<synchronous>, transform_indices = @transform_3, window_bounds = array<i64: 8, 1>}, {transform_indices = @transform_4, window_bounds = array<i64: 1, 8, 256>}]} {
    %c0 = arith.constant 0 : index
    %c0_0 = arith.constant 0 : index
    %c0_1 = arith.constant 0 : index
    %0 = vector.load %arg2[%c0, %c0_0, %c0_1] : memref<1x4x256xbf16, #tpu.memory_space<vmem>>, vector<1x4x256xbf16>
    %1 = vector.shape_cast %0 : vector<1x4x256xbf16> to vector<4x256xbf16>
    %c0_2 = arith.constant 0 : index
    %c0_3 = arith.constant 0 : index
    %c0_4 = arith.constant 0 : index
    %2 = vector.load %arg3[%c0_2, %c0_3, %c0_4] : memref<1x4x128xbf16, #tpu.memory_space<vmem>>, vector<1x4x128xbf16>
    %3 = vector.shape_cast %2 : vector<1x4x128xbf16> to vector<4x128xbf16>
    %4 = tpu.concatenate %1, %3 in 1 : vector<4x256xbf16>, vector<4x128xbf16> -> vector<4x384xbf16>
    %5 = vector.extract_strided_slice %4 {offsets = [0, 0], sizes = [4, 256], strides = [1, 1]} : vector<4x384xbf16> to vector<4x256xbf16>
    %6 = vector.extract_strided_slice %4 {offsets = [0, 1], sizes = [4, 256], strides = [1, 1]} : vector<4x384xbf16> to vector<4x256xbf16>
    %7 = vector.extract_strided_slice %4 {offsets = [0, 2], sizes = [4, 256], strides = [1, 1]} : vector<4x384xbf16> to vector<4x256xbf16>
    %8 = vector.extract_strided_slice %4 {offsets = [0, 16], sizes = [4, 256], strides = [1, 1]} : vector<4x384xbf16> to vector<4x256xbf16>
    %9 = vector.extract_strided_slice %4 {offsets = [0, 17], sizes = [4, 256], strides = [1, 1]} : vector<4x384xbf16> to vector<4x256xbf16>
    %10 = vector.extract_strided_slice %4 {offsets = [0, 18], sizes = [4, 256], strides = [1, 1]} : vector<4x384xbf16> to vector<4x256xbf16>
    %11 = vector.extract_strided_slice %4 {offsets = [0, 32], sizes = [4, 256], strides = [1, 1]} : vector<4x384xbf16> to vector<4x256xbf16>
    %12 = vector.extract_strided_slice %4 {offsets = [0, 33], sizes = [4, 256], strides = [1, 1]} : vector<4x384xbf16> to vector<4x256xbf16>
    %13 = vector.extract_strided_slice %4 {offsets = [0, 34], sizes = [4, 256], strides = [1, 1]} : vector<4x384xbf16> to vector<4x256xbf16>
    %14 = tpu.concatenate %5, %6, %7, %8, %9, %10, %11, %12, %13 in 0 : vector<4x256xbf16>, vector<4x256xbf16>, vector<4x256xbf16>, vector<4x256xbf16>, vector<4x256xbf16>, vector<4x256xbf16>, vector<4x256xbf16>, vector<4x256xbf16>, vector<4x256xbf16> -> vector<36x256xbf16>
    %c0_5 = arith.constant 0 : index
    %c0_6 = arith.constant 0 : index
    %15 = vector.load %arg4[%c0_5, %c0_6] : memref<8x36xbf16, #tpu.memory_space<vmem>>, vector<8x36xbf16>
    %cst = arith.constant dense<0.000000e+00> : vector<8x256xf32>
    %16 = tpu.matmul %15, %14, %cst {dimension_numbers = #tpu.dot_dimension_numbers<[1], [0], [0], [1], [0, 0, 1, 1], [], []>} : vector<8x36xbf16>, vector<36x256xbf16>, vector<8x256xf32> -> vector<8x256xf32>
    %c0_7 = arith.constant 0 : index
    %c0_8 = arith.constant 0 : index
    %17 = vector.load %arg5[%c0_7, %c0_8] : memref<8x1xf32, #tpu.memory_space<vmem>>, vector<8x1xf32>
    %18 = vector.broadcast %17 : vector<8x1xf32> to vector<8x256xf32>
    %19 = arith.addf %16, %18 : vector<8x256xf32>
    %c0_9 = arith.constant 0 : index
    %c0_10 = arith.constant 0 : index
    %c0_11 = arith.constant 0 : index
    %20 = vector.load %arg6[%c0_9, %c0_10, %c0_11] : memref<1x8x256xf32, #tpu.memory_space<vmem>>, vector<1x8x256xf32>
    %21 = vector.shape_cast %20 : vector<1x8x256xf32> to vector<8x256xf32>
    %22 = vector.shape_cast %19 : vector<8x256xf32> to vector<1x8x256xf32>
    tpu.vector_store %arg6[%c0_9, %c0_10, %c0_11], %22 {strides = array<i32>} : memref<1x8x256xf32, #tpu.memory_space<vmem>>, vector<1x8x256xf32>,
    return
  }
  func.func @transform_0(%arg0: i32, %arg1: i32) -> (i32, i32, i32) {
    %c0_i32 = arith.constant 0 : i32
    %c0_i32_0 = arith.constant 0 : i32
    return %arg0, %c0_i32, %arg1 : i32, i32, i32
  }
  func.func @transform_1(%arg0: i32, %arg1: i32) -> (i32, i32, i32) {
    %c1_i32 = arith.constant 1 : i32
    %0 = arith.addi %arg1, %c1_i32 : i32
    %c2_i32 = arith.constant 2 : i32
    %1 = arith.muli %0, %c2_i32 : i32
    %c0_i32 = arith.constant 0 : i32
    %c0_i32_0 = arith.constant 0 : i32
    return %arg0, %c0_i32, %1 : i32, i32, i32
  }
  func.func @transform_2(%arg0: i32, %arg1: i32) -> (i32, i32) {
    %c0_i32 = arith.constant 0 : i32
    %c0_i32_0 = arith.constant 0 : i32
    %c0_i32_1 = arith.constant 0 : i32
    return %c0_i32, %c0_i32_0 : i32, i32
  }
  func.func @transform_3(%arg0: i32, %arg1: i32) -> (i32, i32) {
    %c0_i32 = arith.constant 0 : i32
    %c0_i32_0 = arith.constant 0 : i32
    %c0_i32_1 = arith.constant 0 : i32
    return %c0_i32, %c0_i32_0 : i32, i32
  }
  func.func @transform_4(%arg0: i32, %arg1: i32) -> (i32, i32, i32) {
    %c0_i32 = arith.constant 0 : i32
    %c0_i32_0 = arith.constant 0 : i32
    return %arg0, %c0_i32, %arg1 : i32, i32, i32
  }
}

</mosaic_0001>

<llo_original>
// kernel: tpu_custom_call.1
$region0: #{tpu_custom_call.1}
  #allocation0 [shape = 'u32[]', space=smem, size = 0x4, offset = 0x4, fixed_abs, tag = 'smem constant byte address 0x4 - core index']
  #allocation1 [shape = 'u32[144,128]{1,0:T(1,128)}', space=vmem, size = 0x12000, scoped, tag = 'internal scratch']
  %s0 = inlined_call_operand.hbm [shape: bf16[2,4,384], index: 0, kind: input, shape index: {}]
  %s1 = inlined_call_operand.hbm [shape: bf16[2,4,384], index: 1, kind: input, shape index: {}]
  %s2 = inlined_call_operand.vmem [shape: bf16[8,36], index: 2, kind: input, shape index: {}]
  %s3 = inlined_call_operand.vmem [shape: f32[8,1], index: 3, kind: input, shape index: {}]
  %s4 = inlined_call_operand.hbm [shape: f32[2,8,256], index: 4, kind: output, shape index: {}]
  %s5 = sld [smem:[#allocation0]]
  $region57: #{tpu_custom_call.1} parent=0
    _
  %s7 = ssub.s32 1, %s5
  %s8 = scalar_select 0, %s7, %s5
  $region1: #{tpu_custom_call.1} parent=0
    #allocation2 [shape = 'u8[4096]{0}', space=vmem, size = 0x1000, scoped, tag = 'input window, operand 0']
    #allocation3 [shape = 's32[2]{0}', space=sflag, size = 0x8, scoped, tag = 'scoped memory for tpu_custom_call.1']
    #allocation4 [shape = 's32[2]{0}', space=sflag, size = 0x8, scoped, tag = 'scoped memory for tpu_custom_call.1']
    #allocation5 [shape = 'u8[2048]{0}', space=vmem, size = 0x800, scoped, tag = 'input window, operand 1']
    #allocation6 [shape = 's32[2]{0}', space=sflag, size = 0x8, scoped, tag = 'scoped memory for tpu_custom_call.1']
    #allocation7 [shape = 'u8[16384]{0}', space=vmem, size = 0x4000, scoped, tag = 'output window, operand 0']
    %9 = vsyncpa [#allocation3], 0
    %s10 = scalar_lea.sflag [#allocation3], 1
    %11 = vsyncpa %s10, 0
    %12 = vsyncpa [#allocation6], 0
    %s13 = scalar_lea.sflag [#allocation6], 1
    %14 = vsyncpa %s13, 0
    %15 = vsyncpa [#allocation4], 0
    %s16 = scalar_lea.sflag [#allocation4], 1
    %17 = vsyncpa %s16, 0
    loop: start=0, step=1, limit=4
    $region2: #{tpu_custom_call.1} parent=1 // loop_pre_header
      _
    $region3: #{tpu_custom_call.1} parent=1 // loop_header
      %s19 = sphi 0, %s23
      %p20 = scmp.ge.s32.totalorder %s19, 4
      %s26 = sphi 0, %s38
      %s27 = sphi 0, %s34
      %s28 = sphi 0, %s26
      %s29 = sphi 0, %s27
      %s30 = sphi 0, %s28
      %s31 = sphi 0, %s29
      %s43 = sphi 0, %s45
      %s46 = sphi 0, %s43
      %s47 = sphi 0, %s46
      %s63 = sphi 0, %s47
      %s75 = sphi 0, %s77
      %s78 = sphi 0, %s75
      %s79 = sphi 0, %s78
      %s95 = sphi 0, %s79
      %s99 = sphi 0, %s99
      %s101 = sphi 0, %s99
      %s102 = sphi 0, %s101
      %s116 = sphi 0, %s102
      %s120 = sphi 0, %s120
      %s122 = sphi 0, %s120
      %s123 = sphi 0, %s122
      %s137 = sphi 0, %s123
      %s145 = sphi 0, %s147
      %s148 = sphi 0, %s145
      %s149 = sphi 0, %s148
      %s165 = sphi 0, %s149
    $region4: #{tpu_custom_call.1} parent=1 // loop_header_branch
      %22 = sbr.rel (%p20) target = $region8
    $region5: #{tpu_custom_call.1} parent=1 // loop_body
      %s24 = ssub.s32 %s19, 1
      %s25 = ssub.s32 %s19, 2
      %s32 = sadd.s32 1, %s27
      %p33 = scmp.ge.s32.totalorder %s32, 1
      %s34 = scalar_select %p33, 0, %s32
      %s35 = sadd.s32 1, %s26
      %s36 = scalar_select %p33, %s35, %s26
      %p37 = scmp.ge.s32.totalorder %s36, 2
      %s38 = scalar_select %p37, 0, %s36
      %s39 = ssub.s32 %s26, %s38
      %s40 = ssub.s32 %s27, %s34
      %s41 = sor.u32 %s39, %s40
      %p42 = scmp.eq.s32.totalorder %s41, 0
      %s44 = sadd.s32 %s43, 1
      %s45 = scalar_select %p42, %s43, %s44
      %p48 = pneg %p42
      %p49 = scmp.eq.s32.totalorder %s19, 1
      %p50 = por %p48, %p49
      %p51 = scmp.ne.s32.totalorder %s43, %s46
      %p52 = scmp.eq.s32.totalorder %s19, 0
      %p53 = por %p51, %p52
      %p54 = scmp.ne.s32.totalorder %s43, %s46
      %p55 = scmp.eq.s32.totalorder %s24, 1
      %p56 = por %p54, %p55
      %p57 = scmp.ne.s32.totalorder %s46, %s47
      %p58 = scmp.eq.s32.totalorder %s24, 0
      %p59 = por %p57, %p58
      %p60 = scmp.ne.s32.totalorder %s46, %s47
      %p61 = scmp.eq.s32.totalorder %s25, 1
      %p62 = por %p60, %p61
      %p64 = scmp.ne.s32.totalorder %s47, %s63
      %p65 = scmp.eq.s32.totalorder %s25, 0
      %p66 = por %p64, %p65
      %s67 = sadd.s32 %s27, 1
      %s68 = smul.u32 %s67, 2
      %s69 = sadd.s32 %s34, 1
      %s70 = smul.u32 %s69, 2
      %s71 = ssub.s32 %s26, %s38
      %s72 = ssub.s32 %s68, %s70
      %s73 = sor.u32 %s71, %s72
      %p74 = scmp.eq.s32.totalorder %s73, 0
      %s76 = sadd.s32 %s75, 1
      %s77 = scalar_select %p74, %s75, %s76
      %p80 = pneg %p74
      %p81 = scmp.eq.s32.totalorder %s19, 1
      %p82 = por %p80, %p81
      %p83 = scmp.ne.s32.totalorder %s75, %s78
      %p84 = scmp.eq.s32.totalorder %s19, 0
      %p85 = por %p83, %p84
      %p86 = scmp.ne.s32.totalorder %s75, %s78
      %p87 = scmp.eq.s32.totalorder %s24, 1
      %p88 = por %p86, %p87
      %p89 = scmp.ne.s32.totalorder %s78, %s79
      %p90 = scmp.eq.s32.totalorder %s24, 0
      %p91 = por %p89, %p90
      %p92 = scmp.ne.s32.totalorder %s78, %s79
      %p93 = scmp.eq.s32.totalorder %s25, 1
      %p94 = por %p92, %p93
      %p96 = scmp.ne.s32.totalorder %s79, %s95
      %p97 = scmp.eq.s32.totalorder %s25, 0
      %p98 = por %p96, %p97
      %s100 = sadd.s32 %s99, 1
      %p103 = scmp.eq.s32.totalorder %s19, 1
      %p104 = scmp.ne.s32.totalorder %s99, %s101
      %p105 = scmp.eq.s32.totalorder %s19, 0
      %p106 = por %p104, %p105
      %p107 = scmp.ne.s32.totalorder %s99, %s101
      %p108 = scmp.eq.s32.totalorder %s24, 1
      %p109 = por %p107, %p108
      %p110 = scmp.ne.s32.totalorder %s101, %s102
      %p111 = scmp.eq.s32.totalorder %s24, 0
      %p112 = por %p110, %p111
      %p113 = scmp.ne.s32.totalorder %s101, %s102
      %p114 = scmp.eq.s32.totalorder %s25, 1
      %p115 = por %p113, %p114
      %p117 = scmp.ne.s32.totalorder %s102, %s116
      %p118 = scmp.eq.s32.totalorder %s25, 0
      %p119 = por %p117, %p118
      %s121 = sadd.s32 %s120, 1
      %p124 = scmp.eq.s32.totalorder %s19, 1
      %p125 = scmp.ne.s32.totalorder %s120, %s122
      %p126 = scmp.eq.s32.totalorder %s19, 0
      %p127 = por %p125, %p126
      %p128 = scmp.ne.s32.totalorder %s120, %s122
      %p129 = scmp.eq.s32.totalorder %s24, 1
      %p130 = por %p128, %p129
      %p131 = scmp.ne.s32.totalorder %s122, %s123
      %p132 = scmp.eq.s32.totalorder %s24, 0
      %p133 = por %p131, %p132
      %p134 = scmp.ne.s32.totalorder %s122, %s123
      %p135 = scmp.eq.s32.totalorder %s25, 1
      %p136 = por %p134, %p135
      %p138 = scmp.ne.s32.totalorder %s123, %s137
      %p139 = scmp.eq.s32.totalorder %s25, 0
      %p140 = por %p138, %p139
      %s141 = ssub.s32 %s26, %s38
      %s142 = ssub.s32 %s27, %s34
      %s143 = sor.u32 %s141, %s142
      %p144 = scmp.eq.s32.totalorder %s143, 0
      %s146 = sadd.s32 %s145, 1
      %s147 = scalar_select %p144, %s145, %s146
      %p150 = pneg %p144
      %p151 = scmp.eq.s32.totalorder %s19, 1
      %p152 = por %p150, %p151
      %p153 = scmp.ne.s32.totalorder %s145, %s148
      %p154 = scmp.eq.s32.totalorder %s19, 0
      %p155 = por %p153, %p154
      %p156 = scmp.ne.s32.totalorder %s145, %s148
      %p157 = scmp.eq.s32.totalorder %s24, 1
      %p158 = por %p156, %p157
      %p159 = scmp.ne.s32.totalorder %s148, %s149
      %p160 = scmp.eq.s32.totalorder %s24, 0
      %p161 = por %p159, %p160
      %p162 = scmp.ne.s32.totalorder %s148, %s149
      %p163 = scmp.eq.s32.totalorder %s25, 1
      %p164 = por %p162, %p163
      %p166 = scmp.ne.s32.totalorder %s149, %s165
      %p167 = scmp.eq.s32.totalorder %s25, 0
      %p168 = por %p166, %p167
      %p169 = scmp.le.s32.totalorder 1, %s19
      %p170 = scmp.lt.s32.totalorder %s19, 3
      %p171 = pnand %p169, %p170
      %p172 = pneg %p171
      // Predicated region
      $region9: #{tpu_custom_call.1} parent=5 // pred_check
        _
      $region10: #{tpu_custom_call.1} parent=5 // pred_check_branch
        %174 = sbr.rel (%p171) target = $region12
      $region11: #{tpu_custom_call.1} parent=5 // pred_region
        %s175 = ssub.s32 %s19, 1
        // Predicated region
        $region13: #{tpu_custom_call.1} parent=11 // pred_check
          %p176 = pneg %p112
        $region14: #{tpu_custom_call.1} parent=11 // pred_check_branch
          %178 = sbr.rel (%p176) target = $region16
        $region15: #{tpu_custom_call.1} parent=11 // pred_region
          _
        $region16: #{tpu_custom_call.1} parent=11 // pred_fallthru
          _
        // Predicated region
        $region17: #{tpu_custom_call.1} parent=11 // pred_check
          %p179 = pneg %p133
        $region18: #{tpu_custom_call.1} parent=11 // pred_check_branch
          %181 = sbr.rel (%p179) target = $region20
        $region19: #{tpu_custom_call.1} parent=11 // pred_region
          _
        $region20: #{tpu_custom_call.1} parent=11 // pred_fallthru
          _
      $region12: #{tpu_custom_call.1} parent=5 // pred_fallthru
        _
      %p182 = scmp.lt.s32.totalorder %s19, 2
      // Predicated region
      $region21: #{tpu_custom_call.1} parent=5 // pred_check
        %p183 = pneg %p182
      $region22: #{tpu_custom_call.1} parent=5 // pred_check_branch
        %185 = sbr.rel (%p183) target = $region24
      $region23: #{tpu_custom_call.1} parent=5 // pred_region
        // Predicated region
        $region25: #{tpu_custom_call.1} parent=23 // pred_check
          %p186 = pneg %p53
        $region26: #{tpu_custom_call.1} parent=23 // pred_check_branch
          %188 = sbr.rel (%p186) target = $region28
        $region27: #{tpu_custom_call.1} parent=23 // pred_region
          %s189 = sand.u32 %s43, 1
          %s190 = scalar_lea.sflag [#allocation3], %s189
          %s191 = sand.u32 %s43, 1
          %s192 = smul.addr %s191, 4
          %s193 = scalar_lea.vmem [#allocation2], %s192
          %s194 = smul.u32 2, %s27
          %s195 = ssub.s32 3, %s194
          %p196 = scmp.lt.s32.totalorder %s195, 2
          %s197 = scalar_select %p196, %s195, 2
          %s198 = smul.u32 32, %s197
          %s200 = ssub.s32 64, %s198
          %201 = vsyncadd %s190, %s200
          %p202 = scmp.ne.s32.totalorder 0, %s198
          %s203 = smul.addr %s26, 3
          %s204 = sadd.s32 %s194, %s203
          %s205 = smul.addr %s204, 32
          %s206 = scalar_lea.hbm %s0, %s205
          %s207 = smul.u32 %s197, 2
          %s208 = sshll.u32 %s207, 4
          %s209 = sshll.u32 %s193, 4
          %s210 = int_to_ptr.vmem [resolvable:$true] %s209
          %212 = dma.hbm_to_vmem [thread:$0]  (%p202), %s206, %s208, %s210, %s190
        $region28: #{tpu_custom_call.1} parent=23 // pred_fallthru
          _
        // Predicated region
        $region29: #{tpu_custom_call.1} parent=23 // pred_check
          %p213 = pneg %p85
        $region30: #{tpu_custom_call.1} parent=23 // pred_check_branch
          %215 = sbr.rel (%p213) target = $region32
        $region31: #{tpu_custom_call.1} parent=23 // pred_region
          %s216 = sand.u32 %s75, 1
          %s217 = scalar_lea.sflag [#allocation6], %s216
          %s218 = sand.u32 %s75, 1
          %s219 = smul.addr %s218, 2
          %s220 = scalar_lea.vmem [#allocation5], %s219
          %s221 = sadd.s32 %s27, 1
          %s222 = smul.u32 %s221, 2
          %s224 = ssub.s32 32, 32
          %225 = vsyncadd %s217, %s224
          %s226 = smul.addr %s26, 3
          %s227 = sadd.s32 %s222, %s226
          %s228 = smul.addr %s227, 32
          %s229 = scalar_lea.hbm %s1, %s228
          %s231 = sshll.u32 %s220, 4
          %s232 = int_to_ptr.vmem [resolvable:$true] %s231
          %234 = dma.hbm_to_vmem [thread:$0]  %s229, 32, %s232, %s217
        $region32: #{tpu_custom_call.1} parent=23 // pred_fallthru
          _
      $region24: #{tpu_custom_call.1} parent=5 // pred_fallthru
        _
      %p235 = scmp.le.s32.totalorder 1, %s19
      %p236 = scmp.lt.s32.totalorder %s19, 3
      %p237 = pnand %p235, %p236
      %p238 = pneg %p237
      // Predicated region
      $region33: #{tpu_custom_call.1} parent=5 // pred_check
        _
      $region34: #{tpu_custom_call.1} parent=5 // pred_check_branch
        %240 = sbr.rel (%p237) target = $region36
      $region35: #{tpu_custom_call.1} parent=5 // pred_region
        %s241 = ssub.s32 %s19, 1
        %s242 = sand.u32 %s46, 1
        %s243 = scalar_lea.sflag [#allocation3], %s242
        %s244 = sand.u32 %s46, 1
        %s245 = smul.addr %s244, 4
        %s246 = scalar_lea.vmem [#allocation2], %s245
        // Predicated region
        $region37: #{tpu_custom_call.1} parent=35 // pred_check
          %p247 = pneg %p59
        $region38: #{tpu_custom_call.1} parent=35 // pred_check_branch
          %249 = sbr.rel (%p247) target = $region40
        $region39: #{tpu_custom_call.1} parent=35 // pred_region
          %250 = dma.done %s243, 64
        $region40: #{tpu_custom_call.1} parent=35 // pred_fallthru
          _
        %s251 = sand.u32 %s78, 1
        %s252 = scalar_lea.sflag [#allocation6], %s251
        %s253 = sand.u32 %s78, 1
        %s254 = smul.addr %s253, 2
        %s255 = scalar_lea.vmem [#allocation5], %s254
        // Predicated region
        $region41: #{tpu_custom_call.1} parent=35 // pred_check
          %p256 = pneg %p91
        $region42: #{tpu_custom_call.1} parent=35 // pred_check_branch
          %258 = sbr.rel (%p256) target = $region44
        $region43: #{tpu_custom_call.1} parent=35 // pred_region
          %259 = dma.done %s252, 32
        $region44: #{tpu_custom_call.1} parent=35 // pred_fallthru
          _
        %s260 = sand.u32 %s46, 1
        %s261 = scalar_lea.sflag [#allocation3], %s260
        %s262 = sand.u32 %s46, 1
        %s263 = smul.addr %s262, 4
        %s264 = scalar_lea.vmem [#allocation2], %s263
        %p265 = pneg %p59
        %p266 = pneg %p56
        %s267 = sand.u32 %s78, 1
        %s268 = scalar_lea.sflag [#allocation6], %s267
        %s269 = sand.u32 %s78, 1
        %s270 = smul.addr %s269, 2
        %s271 = scalar_lea.vmem [#allocation5], %s270
        %p272 = pneg %p91
        %p273 = pneg %p88
        %p274 = pneg %p112
        %p275 = pneg %p109
        %p276 = pneg %p133
        %p277 = pneg %p130
        %p278 = pneg %p161
        %p279 = pneg %p158
        %s280 = sand.u32 %s148, 1
        %s281 = scalar_lea.sflag [#allocation4], %s280
        %s282 = sand.u32 %s148, 1
        %s283 = smul.addr %s282, 16
        %s284 = scalar_lea.vmem [#allocation7], %s283
        %s285 = smul.u32 2, %s29
        %s286 = ssub.s32 3, %s285
        %p287 = scmp.lt.s32.totalorder %s286, 2
        %s288 = scalar_select %p287, %s286, 2
        %s289 = smul.u32 32, %s288
        %s290 = sadd.s32 %s29, 1
        %s291 = smul.u32 %s290, 2
        %s292 = smul.u32 2, %s29
        %v294 = vld [vmem:[%s246] sm:$0xf]
        %v295 = vld [vmem:[%s255] sm:$0x3]
        %v298 = vunpack.c.l.s4 1983009808
        %v299 = vunpack.c.0.s8 %v298
        %v300 = vlaneseq
        %v301 = vshrl.u32 %v300, 7
        %v302 = vsub.s32 %v299, %v301
        %v303 = vrot.slane %v294, %v302
        %v304 = vcombine.high %v303, %v303
        %v306 = vrot.slane %v303, 6
        %v307 = vrot.slane %v304, 6
        %v308 = vrot.slane %v295, 6
        %309 = vrot.lane.b32.xlu0 %v306, 127
        %v310 = vpop.permute.xlu0 %309
        %311 = vrot.lane.b32.xlu0 %v307, 127
        %v312 = vpop.permute.xlu0 %311
        %313 = vrot.lane.b32.xlu0 %v308, 127
        %v314 = vpop.permute.xlu0 %313
        %vm315 = vcmask 1039360
        %v316 = vsel %vm315, %v310, %v312
        %v317 = vsel %vm315, %v312, %v314
        %v318 = vrot.slane %v303, 4
        %v319 = vrot.slane %v304, 4
        %v320 = vrot.slane %v295, 4
        %321 = vrot.lane.b32.xlu0 %v318, 126
        %v322 = vpop.permute.xlu0 %321
        %323 = vrot.lane.b32.xlu0 %v319, 126
        %v324 = vpop.permute.xlu0 %323
        %325 = vrot.lane.b32.xlu0 %v320, 126
        %v326 = vpop.permute.xlu0 %325
        %vm327 = vcmask 1031168
        %v328 = vsel %vm327, %v322, %v324
        %v329 = vsel %vm327, %v324, %v326
        %v330 = vrot.slane %v303, 2
        %v331 = vrot.slane %v304, 2
        %v332 = vrot.slane %v295, 2
        %333 = vrot.lane.b32.xlu0 %v330, 112
        %v334 = vpop.permute.xlu0 %333
        %335 = vrot.lane.b32.xlu0 %v331, 112
        %v336 = vpop.permute.xlu0 %335
        %337 = vrot.lane.b32.xlu0 %v332, 112
        %v338 = vpop.permute.xlu0 %337
        %vm339 = vcmask 916480
        %v340 = vsel %vm339, %v334, %v336
        %v341 = vsel %vm339, %v336, %v338
        %342 = vrot.lane.b32.xlu0 %v303, 111
        %v343 = vpop.permute.xlu0 %342
        %344 = vrot.lane.b32.xlu0 %v304, 111
        %v345 = vpop.permute.xlu0 %344
        %346 = vrot.lane.b32.xlu0 %v295, 111
        %v347 = vpop.permute.xlu0 %346
        %vm348 = vcmask 908288
        %v349 = vsel %vm348, %v343, %v345
        %v350 = vsel %vm348, %v345, %v347
        %351 = vrot.lane.b32.xlu0 %v306, 110
        %v352 = vpop.permute.xlu0 %351
        %353 = vrot.lane.b32.xlu0 %v307, 110
        %v354 = vpop.permute.xlu0 %353
        %355 = vrot.lane.b32.xlu0 %v308, 110
        %v356 = vpop.permute.xlu0 %355
        %vm357 = vcmask 900096
        %v358 = vsel %vm357, %v352, %v354
        %v359 = vsel %vm357, %v354, %v356
        %360 = vrot.lane.b32.xlu0 %v318, 96
        %v361 = vpop.permute.xlu0 %360
        %362 = vrot.lane.b32.xlu0 %v319, 96
        %v363 = vpop.permute.xlu0 %362
        %364 = vrot.lane.b32.xlu0 %v320, 96
        %v365 = vpop.permute.xlu0 %364
        %vm366 = vcmask 785408
        %v367 = vsel %vm366, %v361, %v363
        %v368 = vsel %vm366, %v363, %v365
        %369 = vrot.lane.b32.xlu0 %v330, 95
        %v370 = vpop.permute.xlu0 %369
        %371 = vrot.lane.b32.xlu0 %v331, 95
        %v372 = vpop.permute.xlu0 %371
        %373 = vrot.lane.b32.xlu0 %v332, 95
        %v374 = vpop.permute.xlu0 %373
        %vm375 = vcmask 777216
        %v376 = vsel %vm375, %v370, %v372
        %v377 = vsel %vm375, %v372, %v374
        %378 = vrot.lane.b32.xlu0 %v303, 94
        %v379 = vpop.permute.xlu0 %378
        %380 = vrot.lane.b32.xlu0 %v304, 94
        %v381 = vpop.permute.xlu0 %380
        %382 = vrot.lane.b32.xlu0 %v295, 94
        %v383 = vpop.permute.xlu0 %382
        %vm384 = vcmask 769024
        %v385 = vsel %vm384, %v379, %v381
        %v386 = vsel %vm384, %v381, %v383
        %vm387 = vcmask 1041408
        %v390 = vsel %vm387, %v303, %v316
        %v393 = vsel %vm387, %v304, %v317
        %vm394 = vcmask 1043456
        %v396 = vsel %vm394, %v390, %v328
        %v398 = vsel %vm394, %v393, %v329
        %vm399 = vcmask 1045504
        %v401 = vsel %vm399, %v396, %v340
        %v404 = vsel %vm399, %v398, %v341
        %v408 = vsel %vm387, %v349, %v358
        %v411 = vsel %vm387, %v350, %v359
        %v413 = vsel %vm394, %v408, %v367
        %v415 = vsel %vm394, %v411, %v368
        %v417 = vsel %vm399, %v413, %v376
        %v420 = vsel %vm399, %v415, %v377
        %v422 = vld [vmem:[%s2] sm:$0xf]
        %v423 = vld [vmem:[%s3] sm:$0xff]
        %425 = vset.pattern.permute.xlu0 0
        %426 = vperm.xlu0 %425, %v423
        %v427 = vpop.permute.xlu0 %426
        %vm429 = vcmask 293888
        %v431 = vsel %vm429, %v422, 0
        %v434 = vsel %vm387, %v385, 0
        %v437 = vsel %vm387, %v386, 0
        %439 = vmatprep.subr.bf16.mxu0 0
        %440 = vmatpush1.bf16.msra.mxu0 0
        %441 = vmatprep.subr.bf16.mxu0 0
        %442 = vmatpush1.bf16.msra.mxu0 0
        %443 = vmatprep.subr.bf16.mxu0 0
        %444 = vmatpush1.bf16.msra.mxu0 0
        %445 = vmatprep.subr.bf16.mxu0 0
        %446 = vmatpush1.bf16.msra.mxu0 0
        %447 = vmatprep.subr.bf16.mxu0 0
        %448 = vmatpush1.bf16.msra.mxu0 0
        %449 = vmatprep.subr.bf16.mxu0 %v437
        %450 = vmatpush1.bf16.msra.mxu0 %v434
        %451 = vmatprep.subr.bf16.mxu0 %v420
        %452 = vmatpush1.bf16.msra.mxu0 %v417
        %453 = vmatprep.subr.bf16.mxu0 %v404
        %454 = vmatpush1.bf16.msra.mxu0 %v401
        %455 = vmatprep.subr.bf16.mxu0 0
        %456 = vmatpush2.bf16.msra.mxu0 0
        %457 = vmatprep.subr.bf16.mxu0 0
        %458 = vmatpush2.bf16.msra.mxu0 0
        %459 = vmatprep.subr.bf16.mxu0 0
        %460 = vmatpush2.bf16.msra.mxu0 0
        %461 = vmatprep.subr.bf16.mxu0 0
        %462 = vmatpush2.bf16.msra.mxu0 0
        %463 = vmatprep.subr.bf16.mxu0 0
        %464 = vmatpush2.bf16.msra.mxu0 0
        %465 = vmatprep.subr.bf16.mxu0 0
        %466 = vmatpush2.bf16.msra.mxu0 0
        %467 = vmatprep.subr.bf16.mxu0 0
        %468 = vmatpush2.bf16.msra.mxu0 0
        %469 = vmatprep.subr.bf16.mxu0 0
        %470 = vmatpush2.bf16.msra.mxu0 0
        %471 = vmatprep.mubr.bf16.mxu0 0
        %472 = vmatmul.mubr.bf16.gmra.mxu0 %v431
        %v473 = vpop.f32.mrf.mxu0
        %v474 = vadd.f32 %v427, %v473
        %v475 = vpop.f32.mrf.mxu0
        %v476 = vadd.f32 %v427, %v475
        %v477 = vpop.f32.mrf.mxu0
        %v478 = vpop.f32.mrf.mxu0
        %479 = vdwg.mxu0
        %480 = vst [vmem:[%s284] sm:$0xff] %v474
        %481 = vst [vmem:[%s284 + $0x8] sm:$0xff] %v476
        %s482 = sand.u32 %s148, 1
        %s483 = scalar_lea.sflag [#allocation4], %s482
        %s484 = sand.u32 %s148, 1
        %s485 = smul.addr %s484, 16
        %s486 = scalar_lea.vmem [#allocation7], %s485
        // Predicated region
        $region45: #{tpu_custom_call.1} parent=35 // pred_check
          %p487 = pneg %p158
        $region46: #{tpu_custom_call.1} parent=35 // pred_check_branch
          %489 = sbr.rel (%p487) target = $region48
        $region47: #{tpu_custom_call.1} parent=35 // pred_region
          %s490 = smul.u32 2, %s29
          %s492 = ssub.s32 256, 256
          %493 = vsyncadd %s483, %s492
          %s494 = smul.addr %s28, 2
          %s495 = sadd.s32 %s490, %s494
          %s496 = smul.addr %s495, 128
          %s497 = scalar_lea.hbm %s4, %s496
          %s499 = sshll.u32 %s486, 4
          %s500 = int_to_ptr.vmem [resolvable:$true] %s499
          %502 = dma.vmem_to_hbm [thread:$0]  %s500, 256, %s497, %s483
        $region48: #{tpu_custom_call.1} parent=35 // pred_fallthru
          _
      $region36: #{tpu_custom_call.1} parent=5 // pred_fallthru
        _
      %p503 = scmp.le.s32.totalorder 2, %s19
      // Predicated region
      $region49: #{tpu_custom_call.1} parent=5 // pred_check
        %p504 = pneg %p503
      $region50: #{tpu_custom_call.1} parent=5 // pred_check_branch
        %506 = sbr.rel (%p504) target = $region52
      $region51: #{tpu_custom_call.1} parent=5 // pred_region
        %s507 = ssub.s32 %s19, 2
        // Predicated region
        $region53: #{tpu_custom_call.1} parent=51 // pred_check
          %p508 = pneg %p164
        $region54: #{tpu_custom_call.1} parent=51 // pred_check_branch
          %510 = sbr.rel (%p508) target = $region56
        $region55: #{tpu_custom_call.1} parent=51 // pred_region
          %s511 = sand.u32 %s149, 1
          %s512 = scalar_lea.sflag [#allocation4], %s511
          %s513 = sand.u32 %s149, 1
          %s514 = smul.addr %s513, 16
          %s515 = scalar_lea.vmem [#allocation7], %s514
          %516 = dma.done %s512, 256
        $region56: #{tpu_custom_call.1} parent=51 // pred_fallthru
          _
      $region52: #{tpu_custom_call.1} parent=5 // pred_fallthru
        _
    $region6: #{tpu_custom_call.1} parent=1 // loop_footer
      %s23 = sadd.s32 1, %s19
    $region7: #{tpu_custom_call.1} parent=1 // loop_footer_branch
      %18 = sbr.rel target = $region3
    $region8: #{tpu_custom_call.1} parent=1 // loop_exit
      _
    %517 = vsyncpa [#allocation3], 1
    %s518 = scalar_lea.sflag [#allocation3], 1
    %519 = vsyncpa %s518, 1
    %520 = vsyncpa [#allocation6], 1
    %s521 = scalar_lea.sflag [#allocation6], 1
    %522 = vsyncpa %s521, 1
    %523 = vsyncpa [#allocation4], 1
    %s524 = scalar_lea.sflag [#allocation4], 1
    %525 = vsyncpa %s524, 1

</llo_original>
